<compile_context>
chip_gen: v7x
topology: tpu7x:2x2x1
jax: 0.10.0
libtpu: 0.0.40
codegen_flags: <defaults>
</compile_context>

<pallas_src>
import jax
import jax.numpy as jnp
from jax.experimental import pallas as pl
from jax.experimental.pallas import tpu as pltpu

STATE_DIM = 3          # Pendulum-v1 observation dim
ACTION_DIM = 1
HIDDEN = 32

# SELU constants (match torch.nn.SELU)
_SELU_ALPHA = 1.6732632423543772
_SELU_SCALE = 1.0507009873554805


def _selu_core(x):
    # Unscaled SELU: scale is folded into the downstream weights in the wrapper.
    # exp only sees non-positive arguments -> no inf in the dead branch.
    neg = _SELU_ALPHA * (jnp.exp(jnp.minimum(x, 0.0)) - 1.0)
    return jnp.where(x > 0, x, neg)


def critic_kernel(sa_ref, w1_ref, b1_ref, w2s_ref, b2_ref, w3s_ref, b3_ref, q_ref):
    """Fused 3-layer MLP forward on one batch tile (feature-major, batch on lanes).

    Shapes:
      sa_ref:  (in_dim, TB)         -- [state; action] columns
      w1_ref:  (32, in_dim)          b1_ref: (32, 1)
      w2s_ref: (32, 32)  (pre-scaled by SELU scale)   b2_ref: (32, 1)
      w3s_ref: (32, 1)   (pre-scaled by SELU scale)
      b3_ref:  (1,) in SMEM
      q_ref:   (1, TB)
    """
    sa = sa_ref[...]                                                   # (in_dim, TB)

    # fc1: single small matmul, bias broadcast along lanes.
    h1 = jnp.dot(w1_ref[...], sa, preferred_element_type=jnp.float32) + b1_ref[...]
    h1 = _selu_core(h1)                                                # (32, TB)

    # fc2 (W2 pre-scaled by SELU scale so h1 only needs the SELU core).
    h2 = jnp.dot(w2s_ref[...], h1, preferred_element_type=jnp.float32) + b2_ref[...]
    h2 = _selu_core(h2)                                                # (32, TB)

    # fc3 (32 -> 1): VPU multiply + sublane reduction (avoids 1-wide MXU tile).
    q = jnp.sum(h2 * w3s_ref[...], axis=0, keepdims=True) + b3_ref[0]  # (1, TB)
    q_ref[...] = q.astype(q_ref.dtype)


def _round_up(x, m):
    return ((x + m - 1) // m) * m


def critic_forward(state, action, params):
    """state: (B, state_dim), action: (B, action_dim) -> q: (B, 1)."""
    w1, b1, w2, b2, w3, b3 = params
    B, sd = state.shape
    _, ad = action.shape
    in_dim = sd + ad

    # ---- batch/lane tile selection -----------------------------------------
    # Big tiles amortize the ~0.35 us per-grid-step overhead; VMEM cost is tiny
    # (a (8, 8192) f32 tile is 256 KiB).  Keep >= 2 tiles for large B so the
    # "parallel" axis shards across v7x's two TensorCores.
    TB_MAX = 8192
    B128 = _round_up(B, 128)
    if B128 >= 256:
        TB = min(TB_MAX, _round_up(B128 // 2, 128))
    else:
        TB = 128
    n_tiles = pl.cdiv(B, TB)
    B_pad = n_tiles * TB

    # ---- single fused prep op: concat + transpose + pad ---------------------
    # One (in_dim, B_pad) feature-major, lane-dense operand (padded cols = 0).
    sa = jnp.concatenate([state, action], axis=1)                      # (B, in_dim)
    sa_t = jnp.pad(sa.T, ((0, 0), (0, B_pad - B)))                     # (in_dim, B_pad)

    # ---- fold SELU scale into downstream weights (once, outside the kernel) --
    w2s = w2 * _SELU_SCALE
    w3s = w3 * _SELU_SCALE
    b3_s = b3.reshape((1,)).astype(jnp.float32)                        # SMEM scalar

    const = lambda i: (0, 0)                                           # weights stay VMEM-resident
    q_pad = pl.pallas_call(
        critic_kernel,
        out_shape=jax.ShapeDtypeStruct((1, B_pad), jnp.float32),
        grid=(n_tiles,),
        in_specs=[
            pl.BlockSpec((in_dim, TB), lambda i: (0, i)),              # [state; action] tile
            pl.BlockSpec((HIDDEN, in_dim), const),                     # W1
            pl.BlockSpec((HIDDEN, 1), const),                          # b1
            pl.BlockSpec((HIDDEN, HIDDEN), const),                     # W2 * scale
            pl.BlockSpec((HIDDEN, 1), const),                          # b2
            pl.BlockSpec((HIDDEN, 1), const),                          # w3 * scale
            pl.BlockSpec(memory_space=pltpu.MemorySpace.SMEM),         # b3 scalar
        ],
        out_specs=pl.BlockSpec((1, TB), lambda i: (0, i)),             # lane-dense output row
        compiler_params=pltpu.CompilerParams(
            dimension_semantics=("parallel",)),                        # shard batch tiles across TCs
    )(sa_t, w1, b1, w2s, b2, w3s, b3_s)

    return q_pad[:, :B].T                                              # (B, 1)


def init_params(key, state_dim=STATE_DIM, action_dim=ACTION_DIM, hidden=HIDDEN):
    """Init matching the PyTorch module:
      - kaiming_normal_(fan_in): gain('selu') = 0.75 for fc1/fc2, gain('linear') = 1 for fc3
      - biases: PyTorch Linear default U(-1/sqrt(fan_in), 1/sqrt(fan_in))
    Weights stored (out, in) like torch; the kernel computes W @ x."""
    in_dim = state_dim + action_dim
    k1, k2, k3, kb1, kb2, kb3 = jax.random.split(key, 6)

    std1 = 0.75 / jnp.sqrt(in_dim)
    std2 = 0.75 / jnp.sqrt(hidden)
    std3 = 1.0 / jnp.sqrt(hidden)

    w1 = jax.random.normal(k1, (hidden, in_dim), jnp.float32) * std1   # (32, 4)
    w2 = jax.random.normal(k2, (hidden, hidden), jnp.float32) * std2   # (32, 32)
    w3 = jax.random.normal(k3, (hidden, 1), jnp.float32) * std3        # (32, 1)

    bnd1 = 1.0 / jnp.sqrt(in_dim)
    bnd23 = 1.0 / jnp.sqrt(hidden)
    b1 = jax.random.uniform(kb1, (hidden, 1), jnp.float32, -bnd1, bnd1)
    b2 = jax.random.uniform(kb2, (hidden, 1), jnp.float32, -bnd23, bnd23)
    b3 = jax.random.uniform(kb3, (1, 1), jnp.float32, -bnd23, bnd23)
    return (w1, b1, w2, b2, w3, b3)


if __name__ == "__main__":
    key = jax.random.PRNGKey(0)
    kp, ks, ka = jax.random.split(key, 3)

    B = 2
    state = jax.random.normal(ks, (B, STATE_DIM), jnp.float32)
    action = jax.random.normal(ka, (B, ACTION_DIM), jnp.float32)
    params = init_params(kp)

    q = critic_forward(state, action, params)
    q = jax.block_until_ready(q)

    # Pure-JAX reference (batch-major, same math as the PyTorch module,
    # full SELU -- validates the in-kernel scale folding).
    w1, b1, w2, b2, w3, b3 = params
    sa = jnp.concatenate([state, action], axis=1)                      # (B, 4)
    r = jax.nn.selu(sa @ w1.T + b1[:, 0])
    r = jax.nn.selu(r @ w2.T + b2[:, 0])
    ref = r @ w3 + b3[0, 0]                                            # (B, 1)

    assert q.shape == (B, 1)
    assert jnp.allclose(q, ref, atol=1e-5, rtol=1e-5)

    print("KERNEL_OK")
</pallas_src>

<mosaic_0001>
module attributes {stable_mosaic.version = 11 : i64} {
  func.func @critic_kernel(%arg0: i32, %arg1: memref<4x128xf32, #tpu.memory_space<vmem>>, %arg2: memref<32x4xf32, #tpu.memory_space<vmem>>, %arg3: memref<32x1xf32, #tpu.memory_space<vmem>>, %arg4: memref<32x32xf32, #tpu.memory_space<vmem>>, %arg5: memref<32x1xf32, #tpu.memory_space<vmem>>, %arg6: memref<32x1xf32, #tpu.memory_space<vmem>>, %arg7: memref<1xf32, #tpu.memory_space<smem>>, %arg8: memref<1x128xf32, #tpu.memory_space<vmem>>) attributes {dimension_semantics = [#tpu.dimension_semantics<parallel>], iteration_bounds = array<i64: 1>, scalar_prefetch = 0 : i64, scratch_operands = 0 : i64, tpu.core_type = #tpu.core_type<tc>, window_params = [{transform_indices = @transform_0, window_bounds = array<i64: 4, 128>}, {pipeline_mode = #tpu.pipeline_mode<synchronous>, transform_indices = @transform_1, window_bounds = array<i64: 32, 4>}, {pipeline_mode = #tpu.pipeline_mode<synchronous>, transform_indices = @transform_2, window_bounds = array<i64: 32, 1>}, {pipeline_mode = #tpu.pipeline_mode<synchronous>, transform_indices = @transform_3, window_bounds = array<i64: 32, 32>}, {pipeline_mode = #tpu.pipeline_mode<synchronous>, transform_indices = @transform_4, window_bounds = array<i64: 32, 1>}, {pipeline_mode = #tpu.pipeline_mode<synchronous>, transform_indices = @transform_5, window_bounds = array<i64: 32, 1>}, {transform_indices = @transform_6, window_bounds = array<i64: 1>}, {transform_indices = @transform_7, window_bounds = array<i64: 1, 128>}]} {
    %c0 = arith.constant 0 : index
    %c0_0 = arith.constant 0 : index
    %0 = vector.load %arg1[%c0, %c0_0] : memref<4x128xf32, #tpu.memory_space<vmem>>, vector<4x128xf32>
    %c0_1 = arith.constant 0 : index
    %c0_2 = arith.constant 0 : index
    %1 = vector.load %arg2[%c0_1, %c0_2] : memref<32x4xf32, #tpu.memory_space<vmem>>, vector<32x4xf32>
    %cst = arith.constant dense<0.000000e+00> : vector<32x128xf32>
    %2 = tpu.matmul %1, %0, %cst {dimension_numbers = #tpu.dot_dimension_numbers<[1], [0], [0], [1], [0, 0, 1, 1], [], []>} : vector<32x4xf32>, vector<4x128xf32>, vector<32x128xf32> -> vector<32x128xf32>
    %c0_3 = arith.constant 0 : index
    %c0_4 = arith.constant 0 : index
    %3 = vector.load %arg3[%c0_3, %c0_4] : memref<32x1xf32, #tpu.memory_space<vmem>>, vector<32x1xf32>
    %4 = vector.broadcast %3 : vector<32x1xf32> to vector<32x128xf32>
    %5 = arith.addf %2, %4 : vector<32x128xf32>
    %cst_5 = arith.constant 0.000000e+00 : f32
    %6 = vector.broadcast %cst_5 : f32 to vector<32x128xf32>
    %7 = arith.minimumf %5, %6 : vector<32x128xf32>
    %8 = math.exp %7 : vector<32x128xf32>
    %cst_6 = arith.constant 1.000000e+00 : f32
    %9 = vector.broadcast %cst_6 : f32 to vector<32x128xf32>
    %10 = arith.subf %8, %9 : vector<32x128xf32>
    %cst_7 = arith.constant 1.67326319 : f32
    %11 = vector.broadcast %cst_7 : f32 to vector<32x128xf32>
    %12 = arith.mulf %11, %10 : vector<32x128xf32>
    %cst_8 = arith.constant 0.000000e+00 : f32
    %13 = vector.broadcast %cst_8 : f32 to vector<32x128xf32>
    %14 = arith.cmpf ogt, %5, %13 : vector<32x128xf32>
    %15 = arith.select %14, %5, %12 : vector<32x128xi1>, vector<32x128xf32>
    %c0_9 = arith.constant 0 : index
    %c0_10 = arith.constant 0 : index
    %16 = vector.load %arg4[%c0_9, %c0_10] : memref<32x32xf32, #tpu.memory_space<vmem>>, vector<32x32xf32>
    %cst_11 = arith.constant dense<0.000000e+00> : vector<32x128xf32>
    %17 = tpu.matmul %16, %15, %cst_11 {dimension_numbers = #tpu.dot_dimension_numbers<[1], [0], [0], [1], [0, 0, 1, 1], [], []>} : vector<32x32xf32>, vector<32x128xf32>, vector<32x128xf32> -> vector<32x128xf32>
    %c0_12 = arith.constant 0 : index
    %c0_13 = arith.constant 0 : index
    %18 = vector.load %arg5[%c0_12, %c0_13] : memref<32x1xf32, #tpu.memory_space<vmem>>, vector<32x1xf32>
    %19 = vector.broadcast %18 : vector<32x1xf32> to vector<32x128xf32>
    %20 = arith.addf %17, %19 : vector<32x128xf32>
    %cst_14 = arith.constant 0.000000e+00 : f32
    %21 = vector.broadcast %cst_14 : f32 to vector<32x128xf32>
    %22 = arith.minimumf %20, %21 : vector<32x128xf32>
    %23 = math.exp %22 : vector<32x128xf32>
    %cst_15 = arith.constant 1.000000e+00 : f32
    %24 = vector.broadcast %cst_15 : f32 to vector<32x128xf32>
    %25 = arith.subf %23, %24 : vector<32x128xf32>
    %cst_16 = arith.constant 1.67326319 : f32
    %26 = vector.broadcast %cst_16 : f32 to vector<32x128xf32>
    %27 = arith.mulf %26, %25 : vector<32x128xf32>
    %cst_17 = arith.constant 0.000000e+00 : f32
    %28 = vector.broadcast %cst_17 : f32 to vector<32x128xf32>
    %29 = arith.cmpf ogt, %20, %28 : vector<32x128xf32>
    %30 = arith.select %29, %20, %27 : vector<32x128xi1>, vector<32x128xf32>
    %c0_18 = arith.constant 0 : index
    %c0_19 = arith.constant 0 : index
    %31 = vector.load %arg6[%c0_18, %c0_19] : memref<32x1xf32, #tpu.memory_space<vmem>>, vector<32x1xf32>
    %32 = vector.broadcast %31 : vector<32x1xf32> to vector<32x128xf32>
    %33 = arith.mulf %30, %32 : vector<32x128xf32>
    %cst_20 = arith.constant dense<0.000000e+00> : vector<128xf32>
    %34 = vector.multi_reduction <add>, %33, %cst_20 [0] : vector<32x128xf32> to vector<128xf32>
    %35 = vector.shape_cast %34 : vector<128xf32> to vector<1x128xf32>
    %c0_21 = arith.constant 0 : index
    %36 = memref.load %arg7[%c0_21] : memref<1xf32, #tpu.memory_space<smem>>
    %37 = vector.broadcast %36 : f32 to vector<1x128xf32>
    %38 = arith.addf %35, %37 : vector<1x128xf32>
    %c0_22 = arith.constant 0 : index
    %c0_23 = arith.constant 0 : index
    %39 = vector.load %arg8[%c0_22, %c0_23] : memref<1x128xf32, #tpu.memory_space<vmem>>, vector<1x128xf32>
    tpu.vector_store %arg8[%c0_22, %c0_23], %38 {strides = array<i32>} : memref<1x128xf32, #tpu.memory_space<vmem>>, vector<1x128xf32>,
    return
  }
  func.func @transform_0(%arg0: i32) -> (i32, i32) {
    %c0_i32 = arith.constant 0 : i32
    %c0_i32_0 = arith.constant 0 : i32
    return %c0_i32, %arg0 : i32, i32
  }
  func.func @transform_1(%arg0: i32) -> (i32, i32) {
    %c0_i32 = arith.constant 0 : i32
    %c0_i32_0 = arith.constant 0 : i32
    %c0_i32_1 = arith.constant 0 : i32
    return %c0_i32, %c0_i32_0 : i32, i32
  }
  func.func @transform_2(%arg0: i32) -> (i32, i32) {
    %c0_i32 = arith.constant 0 : i32
    %c0_i32_0 = arith.constant 0 : i32
    %c0_i32_1 = arith.constant 0 : i32
    return %c0_i32, %c0_i32_0 : i32, i32
  }
  func.func @transform_3(%arg0: i32) -> (i32, i32) {
    %c0_i32 = arith.constant 0 : i32
    %c0_i32_0 = arith.constant 0 : i32
    %c0_i32_1 = arith.constant 0 : i32
    return %c0_i32, %c0_i32_0 : i32, i32
  }
  func.func @transform_4(%arg0: i32) -> (i32, i32) {
    %c0_i32 = arith.constant 0 : i32
    %c0_i32_0 = arith.constant 0 : i32
    %c0_i32_1 = arith.constant 0 : i32
    return %c0_i32, %c0_i32_0 : i32, i32
  }
  func.func @transform_5(%arg0: i32) -> (i32, i32) {
    %c0_i32 = arith.constant 0 : i32
    %c0_i32_0 = arith.constant 0 : i32
    %c0_i32_1 = arith.constant 0 : i32
    return %c0_i32, %c0_i32_0 : i32, i32
  }
  func.func @transform_6(%arg0: i32) -> i32 {
    %c0_i32 = arith.constant 0 : i32
    %c0_i32_0 = arith.constant 0 : i32
    return %c0_i32 : i32
  }
  func.func @transform_7(%arg0: i32) -> (i32, i32) {
    %c0_i32 = arith.constant 0 : i32
    %c0_i32_0 = arith.constant 0 : i32
    return %c0_i32, %arg0 : i32, i32
  }
}

</mosaic_0001>

<llo_original>
// kernel: tpu_custom_call.1
$region0: #{tpu_custom_call.1}
  #allocation0 [shape = 'u32[]', space=smem, size = 0x4, offset = 0x4, fixed_abs, tag = 'smem constant byte address 0x4 - core index']
  #allocation1 [shape = 'u32[144,128]{1,0:T(1,128)}', space=vmem, size = 0x12000, scoped, tag = 'internal scratch']
  #allocation2 [shape = 'f32[1]{0:T(128)S(6)}', space=smem, size = 0x200, scoped, tag = 'scoped memory for tpu_custom_call.1']
  %s0 = inlined_call_operand.vmem [shape: f32[4,128], index: 0, kind: input, shape index: {}]
  %s1 = inlined_call_operand.vmem [shape: f32[32,4], index: 1, kind: input, shape index: {}]
  %s2 = inlined_call_operand.vmem [shape: f32[32,1], index: 2, kind: input, shape index: {}]
  %s3 = inlined_call_operand.vmem [shape: f32[32,32], index: 3, kind: input, shape index: {}]
  %s4 = inlined_call_operand.vmem [shape: f32[32,1], index: 4, kind: input, shape index: {}]
  %s5 = inlined_call_operand.vmem [shape: f32[32,1], index: 5, kind: input, shape index: {}]
  %s6 = inlined_call_operand.<no memory space> [shape: f32[1], index: 6, kind: input, shape index: {}]
  %s7 = inlined_call_operand.hbm [shape: f32[1,128], index: 7, kind: output, shape index: {}]
  %s8 = sld [smem:[#allocation0]]
  $region38: #{tpu_custom_call.1} parent=0
    _
  %s10 = ssub.s32 1, %s8
  %s11 = scalar_select 0, %s10, %s8
  %12 = sst [smem:[#allocation2]] %s6
  $region1: #{tpu_custom_call.1} parent=0
    #allocation3 [shape = 'u8[512]{0}', space=vmem, size = 0x400, scoped, tag = 'output window, operand 0, single buffered']
    #allocation4 [shape = 's32[1]{0}', space=sflag, size = 0x4, scoped, tag = 'scoped memory for tpu_custom_call.1']
    %13 = vsyncpa [#allocation4], 0
    // Predicated region
    $region2: #{tpu_custom_call.1} parent=1 // pred_check
      _
    $region3: #{tpu_custom_call.1} parent=1 // pred_check_branch
      %15 = sbr.rel (0) target = $region5
    $region4: #{tpu_custom_call.1} parent=1 // pred_region
      _
    $region5: #{tpu_custom_call.1} parent=1 // pred_fallthru
      _
    // Predicated region
    $region6: #{tpu_custom_call.1} parent=1 // pred_check
      _
    $region7: #{tpu_custom_call.1} parent=1 // pred_check_branch
      %17 = sbr.rel (0) target = $region9
    $region8: #{tpu_custom_call.1} parent=1 // pred_region
      _
    $region9: #{tpu_custom_call.1} parent=1 // pred_fallthru
      _
    // Predicated region
    $region10: #{tpu_custom_call.1} parent=1 // pred_check
      _
    $region11: #{tpu_custom_call.1} parent=1 // pred_check_branch
      %19 = sbr.rel (0) target = $region13
    $region12: #{tpu_custom_call.1} parent=1 // pred_region
      _
    $region13: #{tpu_custom_call.1} parent=1 // pred_fallthru
      _
    // Predicated region
    $region14: #{tpu_custom_call.1} parent=1 // pred_check
      _
    $region15: #{tpu_custom_call.1} parent=1 // pred_check_branch
      %21 = sbr.rel (0) target = $region17
    $region16: #{tpu_custom_call.1} parent=1 // pred_region
      _
    $region17: #{tpu_custom_call.1} parent=1 // pred_fallthru
      _
    // Predicated region
    $region18: #{tpu_custom_call.1} parent=1 // pred_check
      _
    $region19: #{tpu_custom_call.1} parent=1 // pred_check_branch
      %23 = sbr.rel (0) target = $region21
    $region20: #{tpu_custom_call.1} parent=1 // pred_region
      _
    $region21: #{tpu_custom_call.1} parent=1 // pred_fallthru
      _
    // Predicated region
    $region22: #{tpu_custom_call.1} parent=1 // pred_check
      _
    $region23: #{tpu_custom_call.1} parent=1 // pred_check_branch
      %25 = sbr.rel (0) target = $region25
    $region24: #{tpu_custom_call.1} parent=1 // pred_region
      _
    $region25: #{tpu_custom_call.1} parent=1 // pred_fallthru
      _
    // Predicated region
    $region26: #{tpu_custom_call.1} parent=1 // pred_check
      _
    $region27: #{tpu_custom_call.1} parent=1 // pred_check_branch
      %27 = sbr.rel (0) target = $region29
    $region28: #{tpu_custom_call.1} parent=1 // pred_region
      _
    $region29: #{tpu_custom_call.1} parent=1 // pred_fallthru
      _
    %v28 = vld [vmem:[%s0] sm:$0xf]
    %v29 = vld [vmem:[%s1] sm:$0xff]
    %v30 = vld [vmem:[%s1 + $0x8] sm:$0xff]
    %v31 = vld [vmem:[%s1 + $0x10] sm:$0xff]
    %v32 = vld [vmem:[%s1 + $0x18] sm:$0xff]
    %v33 = vld [vmem:[%s2] sm:$0xff]
    %v34 = vld [vmem:[%s2 + $0x8] sm:$0xff]
    %v35 = vld [vmem:[%s2 + $0x10] sm:$0xff]
    %v36 = vld [vmem:[%s2 + $0x18] sm:$0xff]
    %38 = vset.pattern.permute.xlu0 0
    %39 = vperm.xlu0 %38, %v33
    %v40 = vpop.permute.xlu0 %39
    %43 = vset.pattern.permute.xlu0 0
    %44 = vperm.xlu0 %43, %v34
    %v45 = vpop.permute.xlu0 %44
    %48 = vset.pattern.permute.xlu0 0
    %49 = vperm.xlu0 %48, %v35
    %v50 = vpop.permute.xlu0 %49
    %53 = vset.pattern.permute.xlu0 0
    %54 = vperm.xlu0 %53, %v36
    %v55 = vpop.permute.xlu0 %54
    %vm57 = vcmask 31744
    %v59 = vsel %vm57, %v29, 0
    %v62 = vsel %vm57, %v30, 0
    %v65 = vsel %vm57, %v31, 0
    %v68 = vsel %vm57, %v32, 0
    %vm70 = vcmask 1043456
    %v72 = vsel %vm70, %v28, 0
    %74 = vmatprep.subr.mxu0 0.0
    %75 = vmatpush1.msra.mxu0 %v72
    %76 = vmatprep.subr.mxu0 0.0
    %77 = vmatpush1.msra.mxu0 0.0
    %78 = vmatprep.subr.mxu0 0.0
    %79 = vmatpush1.msra.mxu0 0.0
    %80 = vmatprep.subr.mxu0 0.0
    %81 = vmatpush1.msra.mxu0 0.0
    %82 = vmatprep.subr.mxu0 0.0
    %83 = vmatpush1.msra.mxu0 0.0
    %84 = vmatprep.subr.mxu0 0.0
    %85 = vmatpush1.msra.mxu0 0.0
    %86 = vmatprep.subr.mxu0 0.0
    %87 = vmatpush1.msra.mxu0 0.0
    %88 = vmatprep.subr.mxu0 0.0
    %89 = vmatpush1.msra.mxu0 0.0
    %90 = vmatprep.subr.mxu0 0.0
    %91 = vmatpush1.msra.mxu0 0.0
    %92 = vmatprep.subr.mxu0 0.0
    %93 = vmatpush1.msra.mxu0 0.0
    %94 = vmatprep.subr.mxu0 0.0
    %95 = vmatpush1.msra.mxu0 0.0
    %96 = vmatprep.subr.mxu0 0.0
    %97 = vmatpush1.msra.mxu0 0.0
    %98 = vmatprep.subr.mxu0 0.0
    %99 = vmatpush1.msra.mxu0 0.0
    %100 = vmatprep.subr.mxu0 0.0
    %101 = vmatpush1.msra.mxu0 0.0
    %102 = vmatprep.subr.mxu0 0.0
    %103 = vmatpush1.msra.mxu0 0.0
    %104 = vmatprep.subr.mxu0 0.0
    %105 = vmatpush1.msra.mxu0 0.0
    %106 = vmatprep.subr.mxu0 0.0
    %107 = vmatpush1.msra.mxu0 0.0
    %108 = vmatprep.subr.mxu0 0.0
    %109 = vmatpush1.msra.mxu0 0.0
    %110 = vmatprep.subr.mxu0 0.0
    %111 = vmatpush1.msra.mxu0 0.0
    %112 = vmatprep.subr.mxu0 0.0
    %113 = vmatpush1.msra.mxu0 0.0
    %114 = vmatprep.subr.mxu0 0.0
    %115 = vmatpush1.msra.mxu0 0.0
    %116 = vmatprep.subr.mxu0 0.0
    %117 = vmatpush1.msra.mxu0 0.0
    %118 = vmatprep.subr.mxu0 0.0
    %119 = vmatpush1.msra.mxu0 0.0
    %120 = vmatprep.subr.mxu0 0.0
    %121 = vmatpush1.msra.mxu0 0.0
    %122 = vmatprep.subr.mxu0 0.0
    %123 = vmatpush1.msra.mxu0 0.0
    %124 = vmatprep.subr.mxu0 0.0
    %125 = vmatpush1.msra.mxu0 0.0
    %126 = vmatprep.subr.mxu0 0.0
    %127 = vmatpush1.msra.mxu0 0.0
    %128 = vmatprep.subr.mxu0 0.0
    %129 = vmatpush1.msra.mxu0 0.0
    %130 = vmatprep.subr.mxu0 0.0
    %131 = vmatpush1.msra.mxu0 0.0
    %132 = vmatprep.subr.mxu0 0.0
    %133 = vmatpush1.msra.mxu0 0.0
    %134 = vmatprep.subr.mxu0 0.0
    %135 = vmatpush1.msra.mxu0 0.0
    %136 = vmatprep.subr.mxu0 0.0
    %137 = vmatpush1.msra.mxu0 0.0
    %138 = vmatprep.mubr.f32.mxu0 0.0
    %139 = vmatmul.mubr.f32.gmra.mrb[0].mxu0 %v59
    %v140 = vpop.f32.mrb[0].mxu0
    %v141 = vadd.f32 %v40, %v140
    %v142 = vpop.f32.mrb[0].mxu0
    %143 = vmatprep.mubr.f32.mxu0 0.0
    %144 = vmatmul.mubr.f32.gmra.mrb[0].mxu0 %v62
    %v145 = vpop.f32.mrb[0].mxu0
    %v146 = vadd.f32 %v45, %v145
    %v147 = vpop.f32.mrb[0].mxu0
    %148 = vmatprep.mubr.f32.mxu0 0.0
    %149 = vmatmul.mubr.f32.gmra.mrb[0].mxu0 %v65
    %v150 = vpop.f32.mrb[0].mxu0
    %v151 = vadd.f32 %v50, %v150
    %v152 = vpop.f32.mrb[0].mxu0
    %153 = vmatprep.mubr.f32.mxu0 0.0
    %154 = vmatmul.mubr.f32.gmra.mrb[0].mxu0 %v68
    %v155 = vpop.f32.mrb[0].mxu0
    %v156 = vadd.f32 %v55, %v155
    %v157 = vpop.f32.mrb[0].mxu0
    %158 = vdwg.mxu0
    %v159 = vmin.f32 %v141, 0.0
    %v160 = vmin.f32 %v146, 0.0
    %v161 = vmin.f32 %v151, 0.0
    %v162 = vmin.f32 %v156, 0.0
    %v163 = vmul.f32 %v159, 1.442695
    %v164 = vpow.pop %v163
    %v165 = vmul.f32 %v160, 1.442695
    %v166 = vpow.pop %v165
    %v167 = vmul.f32 %v161, 1.442695
    %v168 = vpow.pop %v167
    %v169 = vmul.f32 %v162, 1.442695
    %v170 = vpow.pop %v169
    %v171 = vsub.f32 %v164, 1.0
    %v172 = vsub.f32 %v166, 1.0
    %v173 = vsub.f32 %v168, 1.0
    %v174 = vsub.f32 %v170, 1.0
    %v175 = vmul.f32 %v171, 1.6732632
    %v176 = vmul.f32 %v172, 1.6732632
    %v177 = vmul.f32 %v173, 1.6732632
    %v178 = vmul.f32 %v174, 1.6732632
    %vm179 = vcmp.gt.f32.partialorder %v141, 0.0
    %vm180 = vcmp.gt.f32.partialorder %v146, 0.0
    %vm181 = vcmp.gt.f32.partialorder %v151, 0.0
    %vm182 = vcmp.gt.f32.partialorder %v156, 0.0
    %v183 = vsel %vm179, %v141, %v175
    %v184 = vsel %vm180, %v146, %v176
    %v185 = vsel %vm181, %v151, %v177
    %v186 = vsel %vm182, %v156, %v178
    %v187 = vld [vmem:[%s3] sm:$0xff]
    %v188 = vld [vmem:[%s3 + $0x8] sm:$0xff]
    %v189 = vld [vmem:[%s3 + $0x10] sm:$0xff]
    %v190 = vld [vmem:[%s3 + $0x18] sm:$0xff]
    %v191 = vld [vmem:[%s4] sm:$0xff]
    %v192 = vld [vmem:[%s4 + $0x8] sm:$0xff]
    %v193 = vld [vmem:[%s4 + $0x10] sm:$0xff]
    %v194 = vld [vmem:[%s4 + $0x18] sm:$0xff]
    %196 = vset.pattern.permute.xlu0 0
    %197 = vperm.xlu0 %196, %v191
    %v198 = vpop.permute.xlu0 %197
    %201 = vset.pattern.permute.xlu0 0
    %202 = vperm.xlu0 %201, %v192
    %v203 = vpop.permute.xlu0 %202
    %206 = vset.pattern.permute.xlu0 0
    %207 = vperm.xlu0 %206, %v193
    %v208 = vpop.permute.xlu0 %207
    %211 = vset.pattern.permute.xlu0 0
    %212 = vperm.xlu0 %211, %v194
    %v213 = vpop.permute.xlu0 %212
    %vm215 = vcmask 261120
    %v217 = vsel %vm215, %v187, 0
    %v220 = vsel %vm215, %v188, 0
    %v223 = vsel %vm215, %v189, 0
    %v226 = vsel %vm215, %v190, 0
    %228 = vmatprep.subr.mxu0 0.0
    %229 = vmatpush1.msra.mxu0 %v183
    %230 = vmatprep.subr.mxu0 0.0
    %231 = vmatpush1.msra.mxu0 %v184
    %232 = vmatprep.subr.mxu0 0.0
    %233 = vmatpush1.msra.mxu0 %v185
    %234 = vmatprep.subr.mxu0 0.0
    %235 = vmatpush1.msra.mxu0 %v186
    %236 = vmatprep.subr.mxu0 0.0
    %237 = vmatpush1.msra.mxu0 0.0
    %238 = vmatprep.subr.mxu0 0.0
    %239 = vmatpush1.msra.mxu0 0.0
    %240 = vmatprep.subr.mxu0 0.0
    %241 = vmatpush1.msra.mxu0 0.0
    %242 = vmatprep.subr.mxu0 0.0
    %243 = vmatpush1.msra.mxu0 0.0
    %244 = vmatprep.subr.mxu0 0.0
    %245 = vmatpush1.msra.mxu0 0.0
    %246 = vmatprep.subr.mxu0 0.0
    %247 = vmatpush1.msra.mxu0 0.0
    %248 = vmatprep.subr.mxu0 0.0
    %249 = vmatpush1.msra.mxu0 0.0
    %250 = vmatprep.subr.mxu0 0.0
    %251 = vmatpush1.msra.mxu0 0.0
    %252 = vmatprep.subr.mxu0 0.0
    %253 = vmatpush1.msra.mxu0 0.0
    %254 = vmatprep.subr.mxu0 0.0
    %255 = vmatpush1.msra.mxu0 0.0
    %256 = vmatprep.subr.mxu0 0.0
    %257 = vmatpush1.msra.mxu0 0.0
    %258 = vmatprep.subr.mxu0 0.0
    %259 = vmatpush1.msra.mxu0 0.0
    %260 = vmatprep.subr.mxu0 0.0
    %261 = vmatpush1.msra.mxu0 0.0
    %262 = vmatprep.subr.mxu0 0.0
    %263 = vmatpush1.msra.mxu0 0.0
    %264 = vmatprep.subr.mxu0 0.0
    %265 = vmatpush1.msra.mxu0 0.0
    %266 = vmatprep.subr.mxu0 0.0
    %267 = vmatpush1.msra.mxu0 0.0
    %268 = vmatprep.subr.mxu0 0.0
    %269 = vmatpush1.msra.mxu0 0.0
    %270 = vmatprep.subr.mxu0 0.0
    %271 = vmatpush1.msra.mxu0 0.0
    %272 = vmatprep.subr.mxu0 0.0
    %273 = vmatpush1.msra.mxu0 0.0
    %274 = vmatprep.subr.mxu0 0.0
    %275 = vmatpush1.msra.mxu0 0.0
    %276 = vmatprep.subr.mxu0 0.0
    %277 = vmatpush1.msra.mxu0 0.0
    %278 = vmatprep.subr.mxu0 0.0
    %279 = vmatpush1.msra.mxu0 0.0
    %280 = vmatprep.subr.mxu0 0.0
    %281 = vmatpush1.msra.mxu0 0.0
    %282 = vmatprep.subr.mxu0 0.0
    %283 = vmatpush1.msra.mxu0 0.0
    %284 = vmatprep.subr.mxu0 0.0
    %285 = vmatpush1.msra.mxu0 0.0
    %286 = vmatprep.subr.mxu0 0.0
    %287 = vmatpush1.msra.mxu0 0.0
    %288 = vmatprep.subr.mxu0 0.0
    %289 = vmatpush1.msra.mxu0 0.0
    %290 = vmatprep.subr.mxu0 0.0
    %291 = vmatpush1.msra.mxu0 0.0
    %292 = vmatprep.mubr.f32.mxu0 0.0
    %293 = vmatmul.mubr.f32.gmra.mrb[0].mxu0 %v217
    %v294 = vpop.f32.mrb[0].mxu0
    %v295 = vadd.f32 %v198, %v294
    %v296 = vpop.f32.mrb[0].mxu0
    %297 = vmatprep.mubr.f32.mxu0 0.0
    %298 = vmatmul.mubr.f32.gmra.mrb[0].mxu0 %v220
    %v299 = vpop.f32.mrb[0].mxu0
    %v300 = vadd.f32 %v203, %v299
    %v301 = vpop.f32.mrb[0].mxu0
    %302 = vmatprep.mubr.f32.mxu0 0.0
    %303 = vmatmul.mubr.f32.gmra.mrb[0].mxu0 %v223
    %v304 = vpop.f32.mrb[0].mxu0
    %v305 = vadd.f32 %v208, %v304
    %v306 = vpop.f32.mrb[0].mxu0
    %307 = vmatprep.mubr.f32.mxu0 0.0
    %308 = vmatmul.mubr.f32.gmra.mrb[0].mxu0 %v226
    %v309 = vpop.f32.mrb[0].mxu0
    %v310 = vadd.f32 %v213, %v309
    %v311 = vpop.f32.mrb[0].mxu0
    %312 = vdwg.mxu0
    %v313 = vmin.f32 %v295, 0.0
    %v314 = vmin.f32 %v300, 0.0
    %v315 = vmin.f32 %v305, 0.0
    %v316 = vmin.f32 %v310, 0.0
    %v317 = vmul.f32 %v313, 1.442695
    %v318 = vpow.pop %v317
    %v319 = vmul.f32 %v314, 1.442695
    %v320 = vpow.pop %v319
    %v321 = vmul.f32 %v315, 1.442695
    %v322 = vpow.pop %v321
    %v323 = vmul.f32 %v316, 1.442695
    %v324 = vpow.pop %v323
    %v325 = vsub.f32 %v318, 1.0
    %v326 = vsub.f32 %v320, 1.0
    %v327 = vsub.f32 %v322, 1.0
    %v328 = vsub.f32 %v324, 1.0
    %v329 = vmul.f32 %v325, 1.6732632
    %v330 = vmul.f32 %v326, 1.6732632
    %v331 = vmul.f32 %v327, 1.6732632
    %v332 = vmul.f32 %v328, 1.6732632
    %vm333 = vcmp.gt.f32.partialorder %v295, 0.0
    %vm334 = vcmp.gt.f32.partialorder %v300, 0.0
    %vm335 = vcmp.gt.f32.partialorder %v305, 0.0
    %vm336 = vcmp.gt.f32.partialorder %v310, 0.0
    %v337 = vsel %vm333, %v295, %v329
    %v338 = vsel %vm334, %v300, %v330
    %v339 = vsel %vm335, %v305, %v331
    %v340 = vsel %vm336, %v310, %v332
    %v341 = vld [vmem:[%s5] sm:$0xff]
    %v342 = vld [vmem:[%s5 + $0x8] sm:$0xff]
    %v343 = vld [vmem:[%s5 + $0x10] sm:$0xff]
    %v344 = vld [vmem:[%s5 + $0x18] sm:$0xff]
    %346 = vset.pattern.permute.xlu0 0
    %347 = vperm.xlu0 %346, %v341
    %v348 = vpop.permute.xlu0 %347
    %351 = vset.pattern.permute.xlu0 0
    %352 = vperm.xlu0 %351, %v342
    %v353 = vpop.permute.xlu0 %352
    %356 = vset.pattern.permute.xlu0 0
    %357 = vperm.xlu0 %356, %v343
    %v358 = vpop.permute.xlu0 %357
    %361 = vset.pattern.permute.xlu0 0
    %362 = vperm.xlu0 %361, %v344
    %v363 = vpop.permute.xlu0 %362
    %v365 = vmul.f32 %v337, %v348
    %v366 = vmul.f32 %v338, %v353
    %v367 = vmul.f32 %v339, %v358
    %v368 = vmul.f32 %v340, %v363
    %v369 = vadd.f32 %v365, %v366
    %v370 = vadd.f32 %v369, %v367
    %v371 = vadd.f32 %v370, %v368
    %v372 = vrot.slane %v371, 4
    %v373 = vadd.f32 %v371, %v372
    %v374 = vrot.slane %v373, 2
    %v375 = vadd.f32 %v373, %v374
    %v376 = vrot.slane %v375, 1
    %v377 = vadd.f32 %v375, %v376
    %s378 = sld [smem:[#allocation2]]
    %v379 = vstv %s378
    %v380 = vadd.f32 %v377, %v379
    %381 = vst [vmem:[#allocation3] sm:$0x1] %v380
    // Predicated region
    $region30: #{tpu_custom_call.1} parent=1 // pred_check
      _
    $region31: #{tpu_custom_call.1} parent=1 // pred_check_branch
      %383 = sbr.rel (0) target = $region33
    $region32: #{tpu_custom_call.1} parent=1 // pred_region
      %s385 = ssub.s32 16, 16
      %386 = vsyncadd [#allocation4], %s385
      %s388 = sshll.u32 [#allocation3], 4
      %s389 = int_to_ptr.vmem [resolvable:$true] %s388
      %391 = dma.vmem_to_hbm [thread:$0]  %s389, 16, %s7, [#allocation4]
    $region33: #{tpu_custom_call.1} parent=1 // pred_fallthru
      _
    // Predicated region
    $region34: #{tpu_custom_call.1} parent=1 // pred_check
      _
    $region35: #{tpu_custom_call.1} parent=1 // pred_check_branch
      %393 = sbr.rel (0) target = $region37
    $region36: #{tpu_custom_call.1} parent=1 // pred_region
      %394 = dma.done [#allocation4], 16
    $region37: #{tpu_custom_call.1} parent=1 // pred_fallthru
      _
    %395 = vsyncpa [#allocation4], 1

</llo_original>
